<compile_context>
chip_gen: v7x
topology: tpu7x:2x2x1
jax: 0.10.0
libtpu: 0.0.40
codegen_flags: <defaults>
</compile_context>

<pallas_src>
import jax
import jax.numpy as jnp
from jax.experimental import pallas as pl
from jax.experimental.pallas import tpu as pltpu


def _round_up(n, m):
    return -(-n // m) * m


def _cnn_kernel(x_ref, w1_ref, b1_ref, w2_ref, b2_ref,
                wf1_ref, bf1_ref, wf2_ref, bf2_ref,
                o_ref, a1_ref, p1_ref, a2_ref, p2_ref):
    half1 = p1_ref.shape[1]          # L2 * C1
    half2 = p2_ref.shape[1]          # L4 * C2

    # conv1 + bias + ReLU as one dense matmul (lanes = (pos parity, pos//2, channel))
    a1_ref[...] = jnp.maximum(
        jnp.dot(x_ref[...], w1_ref[...], preferred_element_type=jnp.float32)
        + b1_ref[...], 0.0)
    # maxpool1: even / odd position halves are vreg-aligned 256-lane blocks
    p1_ref[...] = jnp.maximum(a1_ref[:, :half1], a1_ref[:, half1:])

    # conv2 + bias + ReLU as one dense K=256 matmul, then maxpool2 the same way
    a2_ref[...] = jnp.maximum(
        jnp.dot(p1_ref[...], w2_ref[...], preferred_element_type=jnp.float32)
        + b2_ref[...], 0.0)
    p2_ref[...] = jnp.maximum(a2_ref[:, :half2], a2_ref[:, half2:])

    # fc1 + ReLU, then fc2 (weight_decay * sum_p ||p|| is pre-folded into bf2)
    h = jnp.maximum(
        jnp.dot(p2_ref[...], wf1_ref[...], preferred_element_type=jnp.float32)
        + bf1_ref[...], 0.0)
    o_ref[...] = (jnp.dot(h, wf2_ref[...], preferred_element_type=jnp.float32)
                  + bf2_ref[...])


def _build_kernel_weights(params, L, weight_decay):
    """Fold conv banding, pooling lane layout, flatten order and the L2 penalty
    into dense kernel-side weight matrices (done once, host-side)."""
    w1c, b1, w2c, b2, wf1, bf1, wf2, bf2 = params
    C1, C2 = w1c.shape[0], w2c.shape[0]
    H, out_dim = wf1.shape[0], wf2.shape[0]
    L2, L4 = L // 2, L // 4

    # conv1 as (L, L*C1); output lane = (l % 2) * (L2*C1) + (l // 2) * C1 + c
    w1big = jnp.zeros((L, L * C1), jnp.float32)
    for l in range(L):
        col0 = (l % 2) * (L2 * C1) + (l // 2) * C1
        for k in range(3):
            i = l + k - 1                       # padding=1 -> zero rows fall away
            if 0 <= i < L:
                w1big = w1big.at[i, col0:col0 + C1].set(w1c[:, 0, k])
    b1big = jnp.tile(b1, L).reshape(1, L * C1)

    # conv2 as (L2*C1, L2*C2); input lane = p*C1 + cin (post-pool1 layout),
    # output lane = (q % 2) * (L4*C2) + (q // 2) * C2 + cout
    w2big = jnp.zeros((L2 * C1, L2 * C2), jnp.float32)
    for q in range(L2):
        col0 = (q % 2) * (L4 * C2) + (q // 2) * C2
        for k in range(3):
            p = q + k - 1
            if 0 <= p < L2:
                w2big = w2big.at[p * C1:(p + 1) * C1, col0:col0 + C2].set(
                    w2c[:, :, k].T)
    b2big = jnp.tile(b2, L2).reshape(1, L2 * C2)

    # fc1: fold PyTorch's channel-major flatten (idx = c*L4 + m) into row order (m, c)
    wf1big = jnp.transpose(wf1.reshape(H, C2, L4), (2, 1, 0)).reshape(L4 * C2, H)
    bf1big = bf1.reshape(1, H)

    wf2big = wf2.T
    l2 = sum(jnp.sqrt(jnp.sum(p * p)) for p in params)      # scalar constant
    bf2big = bf2.reshape(1, out_dim) + weight_decay * l2
    return w1big, b1big, w2big, b2big, wf1big, bf1big, wf2big, bf2big


def cnn_forward_pallas(x, params, weight_decay=0.01, batch_tile=256):
    """x: (B, input_size) float32; params in PyTorch shapes (see __main__)."""
    w1c, b1, w2c, b2, wf1, bf1, wf2, bf2 = params
    B, L = x.shape
    assert L % 4 == 0
    C1, C2 = w1c.shape[0], w2c.shape[0]
    H, out_dim = wf1.shape[0], wf2.shape[0]
    L2, L4 = L // 2, L // 4

    # Batch tiling: one tile for small B; for large B force an even number of balanced
    # grid steps so v7x can shard the parallel batch axis over both TensorCores.
    if B <= batch_tile:
        nb, TB = 1, _round_up(B, 8)
    else:
        nb = -(-B // batch_tile)
        if nb % 2:
            nb += 1
        TB = _round_up(-(-B // nb), 8)
    B_pad = nb * TB
    xp = jnp.pad(x.astype(jnp.float32), ((0, B_pad - B), (0, 0)))

    (w1big, b1big, w2big, b2big,
     wf1big, bf1big, wf2big, bf2big) = _build_kernel_weights(params, L, weight_decay)

    out = pl.pallas_call(
        _cnn_kernel,
        out_shape=jax.ShapeDtypeStruct((B_pad, out_dim), jnp.float32),
        grid=(nb,),
        in_specs=[
            pl.BlockSpec((TB, L), lambda i: (i, 0)),                 # raw x block
            pl.BlockSpec((L, L * C1), lambda i: (0, 0)),             # conv1 banded
            pl.BlockSpec((1, L * C1), lambda i: (0, 0)),
            pl.BlockSpec((L2 * C1, L2 * C2), lambda i: (0, 0)),      # conv2 banded
            pl.BlockSpec((1, L2 * C2), lambda i: (0, 0)),
            pl.BlockSpec((L4 * C2, H), lambda i: (0, 0)),            # fc1
            pl.BlockSpec((1, H), lambda i: (0, 0)),
            pl.BlockSpec((H, out_dim), lambda i: (0, 0)),            # fc2
            pl.BlockSpec((1, out_dim), lambda i: (0, 0)),
        ],
        out_specs=pl.BlockSpec((TB, out_dim), lambda i: (i, 0)),
        scratch_shapes=[
            pltpu.VMEM((TB, L * C1), jnp.float32),    # conv1 out
            pltpu.VMEM((TB, L2 * C1), jnp.float32),   # pool1 out
            pltpu.VMEM((TB, L2 * C2), jnp.float32),   # conv2 out
            pltpu.VMEM((TB, L4 * C2), jnp.float32),   # pool2 out (fc1 input)
        ],
        compiler_params=pltpu.CompilerParams(
            dimension_semantics=("parallel",)),
    )(xp, w1big, b1big, w2big, b2big, wf1big, bf1big, wf2big, bf2big)
    return out[:B]


def cnn_forward_ref(x, params, weight_decay=0.01):
    """Pure-JAX reference mirroring the PyTorch module exactly (NCL layout)."""
    w1c, b1, w2c, b2, wf1, bf1, wf2, bf2 = params
    B, L = x.shape
    y = x[:, None, :]                                                   # unsqueeze(1)
    y = jax.lax.conv_general_dilated(y, w1c, (1,), ((1, 1),),
                                     dimension_numbers=('NCH', 'OIH', 'NCH'))
    y = jnp.maximum(y + b1[None, :, None], 0.0)
    y = y.reshape(B, y.shape[1], L // 2, 2).max(axis=-1)                # pool1
    y = jax.lax.conv_general_dilated(y, w2c, (1,), ((1, 1),),
                                     dimension_numbers=('NCH', 'OIH', 'NCH'))
    y = jnp.maximum(y + b2[None, :, None], 0.0)
    y = y.reshape(B, y.shape[1], L // 4, 2).max(axis=-1)                # pool2
    f = y.reshape(B, -1)                                                # channel-major flatten
    h = jnp.maximum(f @ wf1.T + bf1, 0.0)
    out = h @ wf2.T + bf2
    l2 = sum(jnp.sqrt(jnp.sum(p ** 2)) for p in params)
    return out + weight_decay * l2


if __name__ == "__main__":
    B, input_size, output_dim = 2, 16, 8
    weight_decay = 0.01
    C1, C2, H = 32, 64, 128
    L4 = input_size // 4

    key = jax.random.PRNGKey(0)
    keys = jax.random.split(key, 10)
    params = (
        0.1 * jax.random.normal(keys[0], (C1, 1, 3), jnp.float32),      # conv1.weight
        0.1 * jax.random.normal(keys[1], (C1,), jnp.float32),           # conv1.bias
        0.1 * jax.random.normal(keys[2], (C2, C1, 3), jnp.float32),     # conv2.weight
        0.1 * jax.random.normal(keys[3], (C2,), jnp.float32),           # conv2.bias
        0.1 * jax.random.normal(keys[4], (H, C2 * L4), jnp.float32),    # fc1.weight
        0.1 * jax.random.normal(keys[5], (H,), jnp.float32),            # fc1.bias
        0.1 * jax.random.normal(keys[6], (output_dim, H), jnp.float32), # fc2.weight
        0.1 * jax.random.normal(keys[7], (output_dim,), jnp.float32),   # fc2.bias
    )

    # small-batch check (single tile)
    x = jax.random.normal(keys[8], (B, input_size), jnp.float32)
    out = jax.block_until_ready(cnn_forward_pallas(x, params, weight_decay))
    assert out.shape == (B, output_dim)
    ref = cnn_forward_ref(x, params, weight_decay)
    if not jnp.allclose(out, ref, rtol=2e-2, atol=2e-2):
        raise AssertionError(
            f"kernel/reference mismatch (B={B}), "
            f"max abs err = {jnp.max(jnp.abs(out - ref))}")

    # larger-batch check (multi-step grid + batch padding path)
    B2 = 300
    x2 = jax.random.normal(keys[9], (B2, input_size), jnp.float32)
    out2 = jax.block_until_ready(cnn_forward_pallas(x2, params, weight_decay))
    assert out2.shape == (B2, output_dim)
    ref2 = cnn_forward_ref(x2, params, weight_decay)
    if not jnp.allclose(out2, ref2, rtol=2e-2, atol=2e-2):
        raise AssertionError(
            f"kernel/reference mismatch (B={B2}), "
            f"max abs err = {jnp.max(jnp.abs(out2 - ref2))}")

    print("KERNEL_OK")
</pallas_src>

<mosaic_0001>
module attributes {stable_mosaic.version = 11 : i64} {
  func.func @_cnn_kernel(%arg0: i32, %arg1: memref<8x16xf32, #tpu.memory_space<vmem>>, %arg2: memref<16x512xf32, #tpu.memory_space<vmem>>, %arg3: memref<1x512xf32, #tpu.memory_space<vmem>>, %arg4: memref<256x512xf32, #tpu.memory_space<vmem>>, %arg5: memref<1x512xf32, #tpu.memory_space<vmem>>, %arg6: memref<256x128xf32, #tpu.memory_space<vmem>>, %arg7: memref<1x128xf32, #tpu.memory_space<vmem>>, %arg8: memref<128x8xf32, #tpu.memory_space<vmem>>, %arg9: memref<1x8xf32, #tpu.memory_space<vmem>>, %arg10: memref<8x8xf32, #tpu.memory_space<vmem>>, %arg11: memref<8x512xf32, #tpu.memory_space<vmem>>, %arg12: memref<8x256xf32, #tpu.memory_space<vmem>>, %arg13: memref<8x512xf32, #tpu.memory_space<vmem>>, %arg14: memref<8x256xf32, #tpu.memory_space<vmem>>) attributes {dimension_semantics = [#tpu.dimension_semantics<parallel>], iteration_bounds = array<i64: 1>, scalar_prefetch = 0 : i64, scratch_operands = 4 : i64, tpu.core_type = #tpu.core_type<tc>, window_params = [{transform_indices = @transform_0, window_bounds = array<i64: 8, 16>}, {pipeline_mode = #tpu.pipeline_mode<synchronous>, transform_indices = @transform_1, window_bounds = array<i64: 16, 512>}, {pipeline_mode = #tpu.pipeline_mode<synchronous>, transform_indices = @transform_2, window_bounds = array<i64: 1, 512>}, {pipeline_mode = #tpu.pipeline_mode<synchronous>, transform_indices = @transform_3, window_bounds = array<i64: 256, 512>}, {pipeline_mode = #tpu.pipeline_mode<synchronous>, transform_indices = @transform_4, window_bounds = array<i64: 1, 512>}, {pipeline_mode = #tpu.pipeline_mode<synchronous>, transform_indices = @transform_5, window_bounds = array<i64: 256, 128>}, {pipeline_mode = #tpu.pipeline_mode<synchronous>, transform_indices = @transform_6, window_bounds = array<i64: 1, 128>}, {pipeline_mode = #tpu.pipeline_mode<synchronous>, transform_indices = @transform_7, window_bounds = array<i64: 128, 8>}, {pipeline_mode = #tpu.pipeline_mode<synchronous>, transform_indices = @transform_8, window_bounds = array<i64: 1, 8>}, {transform_indices = @transform_9, window_bounds = array<i64: 8, 8>}]} {
    %c0 = arith.constant 0 : index
    %c0_0 = arith.constant 0 : index
    %0 = vector.load %arg1[%c0, %c0_0] : memref<8x16xf32, #tpu.memory_space<vmem>>, vector<8x16xf32>
    %c0_1 = arith.constant 0 : index
    %c0_2 = arith.constant 0 : index
    %1 = vector.load %arg2[%c0_1, %c0_2] : memref<16x512xf32, #tpu.memory_space<vmem>>, vector<16x512xf32>
    %cst = arith.constant dense<0.000000e+00> : vector<8x512xf32>
    %2 = tpu.matmul %0, %1, %cst {dimension_numbers = #tpu.dot_dimension_numbers<[1], [0], [0], [1], [0, 0, 1, 1], [], []>} : vector<8x16xf32>, vector<16x512xf32>, vector<8x512xf32> -> vector<8x512xf32>
    %c0_3 = arith.constant 0 : index
    %c0_4 = arith.constant 0 : index
    %3 = vector.load %arg3[%c0_3, %c0_4] : memref<1x512xf32, #tpu.memory_space<vmem>>, vector<1x512xf32>
    %4 = vector.broadcast %3 : vector<1x512xf32> to vector<8x512xf32>
    %5 = arith.addf %2, %4 : vector<8x512xf32>
    %cst_5 = arith.constant 0.000000e+00 : f32
    %6 = vector.broadcast %cst_5 : f32 to vector<8x512xf32>
    %7 = arith.maximumf %5, %6 : vector<8x512xf32>
    %c0_6 = arith.constant 0 : index
    %c0_7 = arith.constant 0 : index
    %8 = vector.load %arg11[%c0_6, %c0_7] : memref<8x512xf32, #tpu.memory_space<vmem>>, vector<8x512xf32>
    tpu.vector_store %arg11[%c0_6, %c0_7], %7 {strides = array<i32>} : memref<8x512xf32, #tpu.memory_space<vmem>>, vector<8x512xf32>,
    %c0_8 = arith.constant 0 : index
    %c0_9 = arith.constant 0 : index
    %9 = vector.load %arg11[%c0_8, %c0_9] : memref<8x512xf32, #tpu.memory_space<vmem>>, vector<8x256xf32>
    %c0_10 = arith.constant 0 : index
    %c256 = arith.constant 256 : index
    %10 = vector.load %arg11[%c0_10, %c256] : memref<8x512xf32, #tpu.memory_space<vmem>>, vector<8x256xf32>
    %11 = arith.maximumf %9, %10 : vector<8x256xf32>
    %c0_11 = arith.constant 0 : index
    %c0_12 = arith.constant 0 : index
    %12 = vector.load %arg12[%c0_11, %c0_12] : memref<8x256xf32, #tpu.memory_space<vmem>>, vector<8x256xf32>
    tpu.vector_store %arg12[%c0_11, %c0_12], %11 {strides = array<i32>} : memref<8x256xf32, #tpu.memory_space<vmem>>, vector<8x256xf32>,
    %c0_13 = arith.constant 0 : index
    %c0_14 = arith.constant 0 : index
    %13 = vector.load %arg12[%c0_13, %c0_14] : memref<8x256xf32, #tpu.memory_space<vmem>>, vector<8x256xf32>
    %c0_15 = arith.constant 0 : index
    %c0_16 = arith.constant 0 : index
    %14 = vector.load %arg4[%c0_15, %c0_16] : memref<256x512xf32, #tpu.memory_space<vmem>>, vector<256x512xf32>
    %cst_17 = arith.constant dense<0.000000e+00> : vector<8x512xf32>
    %15 = tpu.matmul %13, %14, %cst_17 {dimension_numbers = #tpu.dot_dimension_numbers<[1], [0], [0], [1], [0, 0, 1, 1], [], []>} : vector<8x256xf32>, vector<256x512xf32>, vector<8x512xf32> -> vector<8x512xf32>
    %c0_18 = arith.constant 0 : index
    %c0_19 = arith.constant 0 : index
    %16 = vector.load %arg5[%c0_18, %c0_19] : memref<1x512xf32, #tpu.memory_space<vmem>>, vector<1x512xf32>
    %17 = vector.broadcast %16 : vector<1x512xf32> to vector<8x512xf32>
    %18 = arith.addf %15, %17 : vector<8x512xf32>
    %cst_20 = arith.constant 0.000000e+00 : f32
    %19 = vector.broadcast %cst_20 : f32 to vector<8x512xf32>
    %20 = arith.maximumf %18, %19 : vector<8x512xf32>
    %c0_21 = arith.constant 0 : index
    %c0_22 = arith.constant 0 : index
    %21 = vector.load %arg13[%c0_21, %c0_22] : memref<8x512xf32, #tpu.memory_space<vmem>>, vector<8x512xf32>
    tpu.vector_store %arg13[%c0_21, %c0_22], %20 {strides = array<i32>} : memref<8x512xf32, #tpu.memory_space<vmem>>, vector<8x512xf32>,
    %c0_23 = arith.constant 0 : index
    %c0_24 = arith.constant 0 : index
    %22 = vector.load %arg13[%c0_23, %c0_24] : memref<8x512xf32, #tpu.memory_space<vmem>>, vector<8x256xf32>
    %c0_25 = arith.constant 0 : index
    %c256_26 = arith.constant 256 : index
    %23 = vector.load %arg13[%c0_25, %c256_26] : memref<8x512xf32, #tpu.memory_space<vmem>>, vector<8x256xf32>
    %24 = arith.maximumf %22, %23 : vector<8x256xf32>
    %c0_27 = arith.constant 0 : index
    %c0_28 = arith.constant 0 : index
    %25 = vector.load %arg14[%c0_27, %c0_28] : memref<8x256xf32, #tpu.memory_space<vmem>>, vector<8x256xf32>
    tpu.vector_store %arg14[%c0_27, %c0_28], %24 {strides = array<i32>} : memref<8x256xf32, #tpu.memory_space<vmem>>, vector<8x256xf32>,
    %c0_29 = arith.constant 0 : index
    %c0_30 = arith.constant 0 : index
    %26 = vector.load %arg14[%c0_29, %c0_30] : memref<8x256xf32, #tpu.memory_space<vmem>>, vector<8x256xf32>
    %c0_31 = arith.constant 0 : index
    %c0_32 = arith.constant 0 : index
    %27 = vector.load %arg6[%c0_31, %c0_32] : memref<256x128xf32, #tpu.memory_space<vmem>>, vector<256x128xf32>
    %cst_33 = arith.constant dense<0.000000e+00> : vector<8x128xf32>
    %28 = tpu.matmul %26, %27, %cst_33 {dimension_numbers = #tpu.dot_dimension_numbers<[1], [0], [0], [1], [0, 0, 1, 1], [], []>} : vector<8x256xf32>, vector<256x128xf32>, vector<8x128xf32> -> vector<8x128xf32>
    %c0_34 = arith.constant 0 : index
    %c0_35 = arith.constant 0 : index
    %29 = vector.load %arg7[%c0_34, %c0_35] : memref<1x128xf32, #tpu.memory_space<vmem>>, vector<1x128xf32>
    %30 = vector.broadcast %29 : vector<1x128xf32> to vector<8x128xf32>
    %31 = arith.addf %28, %30 : vector<8x128xf32>
    %cst_36 = arith.constant 0.000000e+00 : f32
    %32 = vector.broadcast %cst_36 : f32 to vector<8x128xf32>
    %33 = arith.maximumf %31, %32 : vector<8x128xf32>
    %c0_37 = arith.constant 0 : index
    %c0_38 = arith.constant 0 : index
    %34 = vector.load %arg8[%c0_37, %c0_38] : memref<128x8xf32, #tpu.memory_space<vmem>>, vector<128x8xf32>
    %cst_39 = arith.constant dense<0.000000e+00> : vector<8x8xf32>
    %35 = tpu.matmul %33, %34, %cst_39 {dimension_numbers = #tpu.dot_dimension_numbers<[1], [0], [0], [1], [0, 0, 1, 1], [], []>} : vector<8x128xf32>, vector<128x8xf32>, vector<8x8xf32> -> vector<8x8xf32>
    %c0_40 = arith.constant 0 : index
    %c0_41 = arith.constant 0 : index
    %36 = vector.load %arg9[%c0_40, %c0_41] : memref<1x8xf32, #tpu.memory_space<vmem>>, vector<1x8xf32>
    %37 = vector.broadcast %36 : vector<1x8xf32> to vector<8x8xf32>
    %38 = arith.addf %35, %37 : vector<8x8xf32>
    %c0_42 = arith.constant 0 : index
    %c0_43 = arith.constant 0 : index
    %39 = vector.load %arg10[%c0_42, %c0_43] : memref<8x8xf32, #tpu.memory_space<vmem>>, vector<8x8xf32>
    tpu.vector_store %arg10[%c0_42, %c0_43], %38 {strides = array<i32>} : memref<8x8xf32, #tpu.memory_space<vmem>>, vector<8x8xf32>,
    return
  }
  func.func @transform_0(%arg0: i32) -> (i32, i32) {
    %c0_i32 = arith.constant 0 : i32
    %c0_i32_0 = arith.constant 0 : i32
    return %arg0, %c0_i32 : i32, i32
  }
  func.func @transform_1(%arg0: i32) -> (i32, i32) {
    %c0_i32 = arith.constant 0 : i32
    %c0_i32_0 = arith.constant 0 : i32
    %c0_i32_1 = arith.constant 0 : i32
    return %c0_i32, %c0_i32_0 : i32, i32
  }
  func.func @transform_2(%arg0: i32) -> (i32, i32) {
    %c0_i32 = arith.constant 0 : i32
    %c0_i32_0 = arith.constant 0 : i32
    %c0_i32_1 = arith.constant 0 : i32
    return %c0_i32, %c0_i32_0 : i32, i32
  }
  func.func @transform_3(%arg0: i32) -> (i32, i32) {
    %c0_i32 = arith.constant 0 : i32
    %c0_i32_0 = arith.constant 0 : i32
    %c0_i32_1 = arith.constant 0 : i32
    return %c0_i32, %c0_i32_0 : i32, i32
  }
  func.func @transform_4(%arg0: i32) -> (i32, i32) {
    %c0_i32 = arith.constant 0 : i32
    %c0_i32_0 = arith.constant 0 : i32
    %c0_i32_1 = arith.constant 0 : i32
    return %c0_i32, %c0_i32_0 : i32, i32
  }
  func.func @transform_5(%arg0: i32) -> (i32, i32) {
    %c0_i32 = arith.constant 0 : i32
    %c0_i32_0 = arith.constant 0 : i32
    %c0_i32_1 = arith.constant 0 : i32
    return %c0_i32, %c0_i32_0 : i32, i32
  }
  func.func @transform_6(%arg0: i32) -> (i32, i32) {
    %c0_i32 = arith.constant 0 : i32
    %c0_i32_0 = arith.constant 0 : i32
    %c0_i32_1 = arith.constant 0 : i32
    return %c0_i32, %c0_i32_0 : i32, i32
  }
  func.func @transform_7(%arg0: i32) -> (i32, i32) {
    %c0_i32 = arith.constant 0 : i32
    %c0_i32_0 = arith.constant 0 : i32
    %c0_i32_1 = arith.constant 0 : i32
    return %c0_i32, %c0_i32_0 : i32, i32
  }
  func.func @transform_8(%arg0: i32) -> (i32, i32) {
    %c0_i32 = arith.constant 0 : i32
    %c0_i32_0 = arith.constant 0 : i32
    %c0_i32_1 = arith.constant 0 : i32
    return %c0_i32, %c0_i32_0 : i32, i32
  }
  func.func @transform_9(%arg0: i32) -> (i32, i32) {
    %c0_i32 = arith.constant 0 : i32
    %c0_i32_0 = arith.constant 0 : i32
    return %arg0, %c0_i32 : i32, i32
  }
}

</mosaic_0001>

<llo_original>
// kernel: tpu_custom_call.1
$region0: #{tpu_custom_call.1}
  #allocation0 [shape = 'u32[]', space=smem, size = 0x4, offset = 0x4, fixed_abs, tag = 'smem constant byte address 0x4 - core index']
  #allocation1 [shape = 'u32[144,128]{1,0:T(1,128)}', space=vmem, size = 0x12000, scoped, tag = 'internal scratch']
  #allocation2 [shape = 'f32[8,512]{1,0:T(8,128)}', space=vmem, size = 0x4000, scoped, tag = 'scratch operand']
  #allocation3 [shape = 'f32[8,256]{1,0:T(8,128)}', space=vmem, size = 0x2000, scoped, tag = 'scratch operand']
  #allocation4 [shape = 'f32[8,512]{1,0:T(8,128)}', space=vmem, size = 0x4000, scoped, tag = 'scratch operand']
  #allocation5 [shape = 'f32[8,256]{1,0:T(8,128)}', space=vmem, size = 0x2000, scoped, tag = 'scratch operand']
  %s0 = inlined_call_operand.vmem [shape: f32[8,16], index: 0, kind: input, shape index: {}]
  %s1 = inlined_call_operand.vmem [shape: f32[16,512], index: 1, kind: input, shape index: {}]
  %s2 = inlined_call_operand.vmem [shape: f32[1,512], index: 2, kind: input, shape index: {}]
  %s3 = inlined_call_operand.hbm [shape: f32[256,512], index: 3, kind: input, shape index: {}]
  %s4 = inlined_call_operand.vmem [shape: f32[1,512], index: 4, kind: input, shape index: {}]
  %s5 = inlined_call_operand.hbm [shape: f32[256,128], index: 5, kind: input, shape index: {}]
  %s6 = inlined_call_operand.vmem [shape: f32[1,128], index: 6, kind: input, shape index: {}]
  %s7 = inlined_call_operand.vmem [shape: f32[128,8], index: 7, kind: input, shape index: {}]
  %s8 = inlined_call_operand.vmem [shape: f32[1,8], index: 8, kind: input, shape index: {}]
  %s9 = inlined_call_operand.hbm [shape: f32[8,8], index: 9, kind: output, shape index: {}]
  %s10 = sld [smem:[#allocation0]]
  $region54: #{tpu_custom_call.1} parent=0
    _
  %s12 = ssub.s32 1, %s10
  %s13 = scalar_select 0, %s12, %s10
  $region1: #{tpu_custom_call.1} parent=0
    #allocation6 [shape = 'u8[524288]{0}', space=vmem, size = 0x80000, scoped, tag = 'input window, operand 3, single buffered']
    #allocation7 [shape = 's32[1]{0}', space=sflag, size = 0x4, scoped, tag = 'scoped memory for tpu_custom_call.1']
    #allocation8 [shape = 's32[1]{0}', space=sflag, size = 0x4, scoped, tag = 'scoped memory for tpu_custom_call.1']
    #allocation9 [shape = 'u8[131072]{0}', space=vmem, size = 0x20000, scoped, tag = 'input window, operand 5, single buffered']
    #allocation10 [shape = 's32[1]{0}', space=sflag, size = 0x4, scoped, tag = 'scoped memory for tpu_custom_call.1']
    #allocation11 [shape = 'u8[4096]{0}', space=vmem, size = 0x1000, scoped, tag = 'output window, operand 0, single buffered']
    %14 = vsyncpa [#allocation7], 0
    %15 = vsyncpa [#allocation10], 0
    %16 = vsyncpa [#allocation8], 0
    // Predicated region
    $region2: #{tpu_custom_call.1} parent=1 // pred_check
      _
    $region3: #{tpu_custom_call.1} parent=1 // pred_check_branch
      %18 = sbr.rel (0) target = $region5
    $region4: #{tpu_custom_call.1} parent=1 // pred_region
      _
    $region5: #{tpu_custom_call.1} parent=1 // pred_fallthru
      _
    // Predicated region
    $region6: #{tpu_custom_call.1} parent=1 // pred_check
      _
    $region7: #{tpu_custom_call.1} parent=1 // pred_check_branch
      %20 = sbr.rel (0) target = $region9
    $region8: #{tpu_custom_call.1} parent=1 // pred_region
      _
    $region9: #{tpu_custom_call.1} parent=1 // pred_fallthru
      _
    // Predicated region
    $region10: #{tpu_custom_call.1} parent=1 // pred_check
      _
    $region11: #{tpu_custom_call.1} parent=1 // pred_check_branch
      %22 = sbr.rel (0) target = $region13
    $region12: #{tpu_custom_call.1} parent=1 // pred_region
      _
    $region13: #{tpu_custom_call.1} parent=1 // pred_fallthru
      _
    // Predicated region
    $region14: #{tpu_custom_call.1} parent=1 // pred_check
      _
    $region15: #{tpu_custom_call.1} parent=1 // pred_check_branch
      %24 = sbr.rel (0) target = $region17
    $region16: #{tpu_custom_call.1} parent=1 // pred_region
      %s26 = ssub.s32 16384, 16384
      %27 = vsyncadd [#allocation7], %s26
      %s28 = sshll.u32 [#allocation6], 4
      %s29 = int_to_ptr.vmem [resolvable:$true] %s28
      %34 = dma.hbm_to_vmem [thread:$0]  %s3, 16384, %s29, [#allocation7], 512, 512, 32
    $region17: #{tpu_custom_call.1} parent=1 // pred_fallthru
      _
    // Predicated region
    $region18: #{tpu_custom_call.1} parent=1 // pred_check
      _
    $region19: #{tpu_custom_call.1} parent=1 // pred_check_branch
      %36 = sbr.rel (0) target = $region21
    $region20: #{tpu_custom_call.1} parent=1 // pred_region
      _
    $region21: #{tpu_custom_call.1} parent=1 // pred_fallthru
      _
    // Predicated region
    $region22: #{tpu_custom_call.1} parent=1 // pred_check
      _
    $region23: #{tpu_custom_call.1} parent=1 // pred_check_branch
      %38 = sbr.rel (0) target = $region25
    $region24: #{tpu_custom_call.1} parent=1 // pred_region
      %s40 = ssub.s32 4096, 4096
      %41 = vsyncadd [#allocation10], %s40
      %s42 = sshll.u32 [#allocation9], 4
      %s43 = int_to_ptr.vmem [resolvable:$true] %s42
      %48 = dma.hbm_to_vmem [thread:$0]  %s5, 4096, %s43, [#allocation10], 128, 128, 8
    $region25: #{tpu_custom_call.1} parent=1 // pred_fallthru
      _
    // Predicated region
    $region26: #{tpu_custom_call.1} parent=1 // pred_check
      _
    $region27: #{tpu_custom_call.1} parent=1 // pred_check_branch
      %50 = sbr.rel (0) target = $region29
    $region28: #{tpu_custom_call.1} parent=1 // pred_region
      _
    $region29: #{tpu_custom_call.1} parent=1 // pred_fallthru
      _
    // Predicated region
    $region30: #{tpu_custom_call.1} parent=1 // pred_check
      _
    $region31: #{tpu_custom_call.1} parent=1 // pred_check_branch
      %52 = sbr.rel (0) target = $region33
    $region32: #{tpu_custom_call.1} parent=1 // pred_region
      _
    $region33: #{tpu_custom_call.1} parent=1 // pred_fallthru
      _
    // Predicated region
    $region34: #{tpu_custom_call.1} parent=1 // pred_check
      _
    $region35: #{tpu_custom_call.1} parent=1 // pred_check_branch
      %54 = sbr.rel (0) target = $region37
    $region36: #{tpu_custom_call.1} parent=1 // pred_region
      _
    $region37: #{tpu_custom_call.1} parent=1 // pred_fallthru
      _
    // Predicated region
    $region38: #{tpu_custom_call.1} parent=1 // pred_check
      _
    $region39: #{tpu_custom_call.1} parent=1 // pred_check_branch
      %56 = sbr.rel (0) target = $region41
    $region40: #{tpu_custom_call.1} parent=1 // pred_region
      %57 = dma.done [#allocation7], 16384
    $region41: #{tpu_custom_call.1} parent=1 // pred_fallthru
      _
    // Predicated region
    $region42: #{tpu_custom_call.1} parent=1 // pred_check
      _
    $region43: #{tpu_custom_call.1} parent=1 // pred_check_branch
      %59 = sbr.rel (0) target = $region45
    $region44: #{tpu_custom_call.1} parent=1 // pred_region
      %60 = dma.done [#allocation10], 4096
    $region45: #{tpu_custom_call.1} parent=1 // pred_fallthru
      _
    %v61 = vld [vmem:[%s0] sm:$0xff]
    %v62 = vld [vmem:[%s1] sm:$0xff]
    %v63 = vld [vmem:[%s1 + $0x8] sm:$0xff]
    %v64 = vld [vmem:[%s1 + $0x10] sm:$0xff]
    %v65 = vld [vmem:[%s1 + $0x18] sm:$0xff]
    %v66 = vld [vmem:[%s1 + $0x20] sm:$0xff]
    %v67 = vld [vmem:[%s1 + $0x28] sm:$0xff]
    %v68 = vld [vmem:[%s1 + $0x30] sm:$0xff]
    %v69 = vld [vmem:[%s1 + $0x38] sm:$0xff]
    %v70 = vld [vmem:[%s2] sm:$0xf]
    %v72 = vlaneseq
    %v73 = vshrl.u32 %v72, 7
    %v74 = vsub.s32 0, %v73
    %v75 = vrot.slane %v70, %v74
    %v76 = vlaneseq
    %v77 = vshrl.u32 %v76, 7
    %v78 = vsub.s32 1, %v77
    %v79 = vrot.slane %v70, %v78
    %v80 = vlaneseq
    %v81 = vshrl.u32 %v80, 7
    %v82 = vsub.s32 2, %v81
    %v83 = vrot.slane %v70, %v82
    %v84 = vlaneseq
    %v85 = vshrl.u32 %v84, 7
    %v86 = vsub.s32 3, %v85
    %v87 = vrot.slane %v70, %v86
    %vm92 = vcmask 130048
    %v94 = vsel %vm92, %v61, 0
    %96 = vmatprep.subr.mxu0 %v63
    %97 = vmatpush1.msra.mxu0 %v62
    %98 = vmatprep.subr.mxu0 %v67
    %99 = vmatpush1.msra.mxu0 %v66
    %100 = vmatprep.subr.mxu0 0.0
    %101 = vmatpush1.msra.mxu0 0.0
    %102 = vmatprep.subr.mxu0 0.0
    %103 = vmatpush1.msra.mxu0 0.0
    %104 = vmatprep.subr.mxu0 0.0
    %105 = vmatpush1.msra.mxu0 0.0
    %106 = vmatprep.subr.mxu0 0.0
    %107 = vmatpush1.msra.mxu0 0.0
    %108 = vmatprep.subr.mxu0 0.0
    %109 = vmatpush1.msra.mxu0 0.0
    %110 = vmatprep.subr.mxu0 0.0
    %111 = vmatpush1.msra.mxu0 0.0
    %112 = vmatprep.subr.mxu0 0.0
    %113 = vmatpush1.msra.mxu0 0.0
    %114 = vmatprep.subr.mxu0 0.0
    %115 = vmatpush1.msra.mxu0 0.0
    %116 = vmatprep.subr.mxu0 0.0
    %117 = vmatpush1.msra.mxu0 0.0
    %118 = vmatprep.subr.mxu0 0.0
    %119 = vmatpush1.msra.mxu0 0.0
    %120 = vmatprep.subr.mxu0 0.0
    %121 = vmatpush1.msra.mxu0 0.0
    %122 = vmatprep.subr.mxu0 0.0
    %123 = vmatpush1.msra.mxu0 0.0
    %124 = vmatprep.subr.mxu0 0.0
    %125 = vmatpush1.msra.mxu0 0.0
    %126 = vmatprep.subr.mxu0 0.0
    %127 = vmatpush1.msra.mxu0 0.0
    %128 = vmatprep.subr.mxu0 0.0
    %129 = vmatpush1.msra.mxu0 0.0
    %130 = vmatprep.subr.mxu0 0.0
    %131 = vmatpush1.msra.mxu0 0.0
    %132 = vmatprep.subr.mxu0 0.0
    %133 = vmatpush1.msra.mxu0 0.0
    %134 = vmatprep.subr.mxu0 0.0
    %135 = vmatpush1.msra.mxu0 0.0
    %136 = vmatprep.subr.mxu0 0.0
    %137 = vmatpush1.msra.mxu0 0.0
    %138 = vmatprep.subr.mxu0 0.0
    %139 = vmatpush1.msra.mxu0 0.0
    %140 = vmatprep.subr.mxu0 0.0
    %141 = vmatpush1.msra.mxu0 0.0
    %142 = vmatprep.subr.mxu0 0.0
    %143 = vmatpush1.msra.mxu0 0.0
    %144 = vmatprep.subr.mxu0 0.0
    %145 = vmatpush1.msra.mxu0 0.0
    %146 = vmatprep.subr.mxu0 0.0
    %147 = vmatpush1.msra.mxu0 0.0
    %148 = vmatprep.subr.mxu0 0.0
    %149 = vmatpush1.msra.mxu0 0.0
    %150 = vmatprep.subr.mxu0 0.0
    %151 = vmatpush1.msra.mxu0 0.0
    %152 = vmatprep.subr.mxu0 0.0
    %153 = vmatpush1.msra.mxu0 0.0
    %154 = vmatprep.subr.mxu0 0.0
    %155 = vmatpush1.msra.mxu0 0.0
    %156 = vmatprep.subr.mxu0 0.0
    %157 = vmatpush1.msra.mxu0 0.0
    %158 = vmatprep.subr.mxu0 0.0
    %159 = vmatpush1.msra.mxu0 0.0
    %160 = vmatprep.mubr.f32.mxu0 0.0
    %161 = vmatmul.mubr.f32.gmra.mrb[0].mxu0 %v94
    %v162 = vpop.f32.mrb[0].mxu0
    %v163 = vadd.f32 %v75, %v162
    %v164 = vpop.f32.mrb[0].mxu0
    %v165 = vadd.f32 %v79, %v164
    %166 = vdwg.mxu0
    %167 = vmatprep.subr.mxu0 %v65
    %168 = vmatpush1.msra.mxu0 %v64
    %169 = vmatprep.subr.mxu0 %v69
    %170 = vmatpush1.msra.mxu0 %v68
    %171 = vmatprep.subr.mxu0 0.0
    %172 = vmatpush1.msra.mxu0 0.0
    %173 = vmatprep.subr.mxu0 0.0
    %174 = vmatpush1.msra.mxu0 0.0
    %175 = vmatprep.subr.mxu0 0.0
    %176 = vmatpush1.msra.mxu0 0.0
    %177 = vmatprep.subr.mxu0 0.0
    %178 = vmatpush1.msra.mxu0 0.0
    %179 = vmatprep.subr.mxu0 0.0
    %180 = vmatpush1.msra.mxu0 0.0
    %181 = vmatprep.subr.mxu0 0.0
    %182 = vmatpush1.msra.mxu0 0.0
    %183 = vmatprep.subr.mxu0 0.0
    %184 = vmatpush1.msra.mxu0 0.0
    %185 = vmatprep.subr.mxu0 0.0
    %186 = vmatpush1.msra.mxu0 0.0
    %187 = vmatprep.subr.mxu0 0.0
    %188 = vmatpush1.msra.mxu0 0.0
    %189 = vmatprep.subr.mxu0 0.0
    %190 = vmatpush1.msra.mxu0 0.0
    %191 = vmatprep.subr.mxu0 0.0
    %192 = vmatpush1.msra.mxu0 0.0
    %193 = vmatprep.subr.mxu0 0.0
    %194 = vmatpush1.msra.mxu0 0.0
    %195 = vmatprep.subr.mxu0 0.0
    %196 = vmatpush1.msra.mxu0 0.0
    %197 = vmatprep.subr.mxu0 0.0
    %198 = vmatpush1.msra.mxu0 0.0
    %199 = vmatprep.subr.mxu0 0.0
    %200 = vmatpush1.msra.mxu0 0.0
    %201 = vmatprep.subr.mxu0 0.0
    %202 = vmatpush1.msra.mxu0 0.0
    %203 = vmatprep.subr.mxu0 0.0
    %204 = vmatpush1.msra.mxu0 0.0
    %205 = vmatprep.subr.mxu0 0.0
    %206 = vmatpush1.msra.mxu0 0.0
    %207 = vmatprep.subr.mxu0 0.0
    %208 = vmatpush1.msra.mxu0 0.0
    %209 = vmatprep.subr.mxu0 0.0
    %210 = vmatpush1.msra.mxu0 0.0
    %211 = vmatprep.subr.mxu0 0.0
    %212 = vmatpush1.msra.mxu0 0.0
    %213 = vmatprep.subr.mxu0 0.0
    %214 = vmatpush1.msra.mxu0 0.0
    %215 = vmatprep.subr.mxu0 0.0
    %216 = vmatpush1.msra.mxu0 0.0
    %217 = vmatprep.subr.mxu0 0.0
    %218 = vmatpush1.msra.mxu0 0.0
    %219 = vmatprep.subr.mxu0 0.0
    %220 = vmatpush1.msra.mxu0 0.0
    %221 = vmatprep.subr.mxu0 0.0
    %222 = vmatpush1.msra.mxu0 0.0
    %223 = vmatprep.subr.mxu0 0.0
    %224 = vmatpush1.msra.mxu0 0.0
    %225 = vmatprep.subr.mxu0 0.0
    %226 = vmatpush1.msra.mxu0 0.0
    %227 = vmatprep.subr.mxu0 0.0
    %228 = vmatpush1.msra.mxu0 0.0
    %229 = vmatprep.subr.mxu0 0.0
    %230 = vmatpush1.msra.mxu0 0.0
    %231 = vmatprep.mubr.f32.mxu0 0.0
    %232 = vmatmul.mubr.f32.gmra.mrb[0].mxu0 %v94
    %v233 = vpop.f32.mrb[0].mxu0
    %v234 = vadd.f32 %v83, %v233
    %v235 = vpop.f32.mrb[0].mxu0
    %v236 = vadd.f32 %v87, %v235
    %237 = vdwg.mxu0
    %v238 = vmax.f32 %v163, 0.0
    %v239 = vmax.f32 %v165, 0.0
    %v240 = vmax.f32 %v234, 0.0
    %v241 = vmax.f32 %v236, 0.0
    %242 = vst [vmem:[#allocation2] sm:$0xff] %v238
    %243 = vst [vmem:[#allocation2 + $0x8] sm:$0xff] %v239
    %244 = vst [vmem:[#allocation2 + $0x10] sm:$0xff] %v240
    %245 = vst [vmem:[#allocation2 + $0x18] sm:$0xff] %v241
    %v246 = vld [vmem:[#allocation2] sm:$0xff]
    %v247 = vld [vmem:[#allocation2 + $0x8] sm:$0xff]
    %v248 = vld [vmem:[#allocation2 + $0x10] sm:$0xff]
    %v249 = vld [vmem:[#allocation2 + $0x18] sm:$0xff]
    %v250 = vmax.f32 %v246, %v248
    %v251 = vmax.f32 %v247, %v249
    %252 = vst [vmem:[#allocation3] sm:$0xff] %v250
    %253 = vst [vmem:[#allocation3 + $0x8] sm:$0xff] %v251
    %v254 = vld [vmem:[#allocation3] sm:$0xff]
    %v255 = vld [vmem:[#allocation3 + $0x8] sm:$0xff]
    %v256 = vld [vmem:[#allocation6] sm:$0xff]
    %v257 = vld [vmem:[#allocation6 + $0x8] sm:$0xff]
    %v258 = vld [vmem:[#allocation6 + $0x10] sm:$0xff]
    %v259 = vld [vmem:[#allocation6 + $0x18] sm:$0xff]
    %v260 = vld [vmem:[#allocation6 + $0x20] sm:$0xff]
    %v261 = vld [vmem:[#allocation6 + $0x28] sm:$0xff]
    %v262 = vld [vmem:[#allocation6 + $0x30] sm:$0xff]
    %v263 = vld [vmem:[#allocation6 + $0x38] sm:$0xff]
    %v264 = vld [vmem:[#allocation6 + $0x40] sm:$0xff]
    %v265 = vld [vmem:[#allocation6 + $0x48] sm:$0xff]
    %v266 = vld [vmem:[#allocation6 + $0x50] sm:$0xff]
    %v267 = vld [vmem:[#allocation6 + $0x58] sm:$0xff]
    %v268 = vld [vmem:[#allocation6 + $0x60] sm:$0xff]
    %v269 = vld [vmem:[#allocation6 + $0x68] sm:$0xff]
    %v270 = vld [vmem:[#allocation6 + $0x70] sm:$0xff]
    %v271 = vld [vmem:[#allocation6 + $0x78] sm:$0xff]
    %v272 = vld [vmem:[#allocation6 + $0x80] sm:$0xff]
    %v273 = vld [vmem:[#allocation6 + $0x88] sm:$0xff]
    %v274 = vld [vmem:[#allocation6 + $0x90] sm:$0xff]
    %v275 = vld [vmem:[#allocation6 + $0x98] sm:$0xff]
    %v276 = vld [vmem:[#allocation6 + $0xa0] sm:$0xff]
    %v277 = vld [vmem:[#allocation6 + $0xa8] sm:$0xff]
    %v278 = vld [vmem:[#allocation6 + $0xb0] sm:$0xff]
    %v279 = vld [vmem:[#allocation6 + $0xb8] sm:$0xff]
    %v280 = vld [vmem:[#allocation6 + $0xc0] sm:$0xff]
    %v281 = vld [vmem:[#allocation6 + $0xc8] sm:$0xff]
    %v282 = vld [vmem:[#allocation6 + $0xd0] sm:$0xff]
    %v283 = vld [vmem:[#allocation6 + $0xd8] sm:$0xff]
    %v284 = vld [vmem:[#allocation6 + $0xe0] sm:$0xff]
    %v285 = vld [vmem:[#allocation6 + $0xe8] sm:$0xff]
    %v286 = vld [vmem:[#allocation6 + $0xf0] sm:$0xff]
    %v287 = vld [vmem:[#allocation6 + $0xf8] sm:$0xff]
    %v288 = vld [vmem:[#allocation6 + $0x100] sm:$0xff]
    %v289 = vld [vmem:[#allocation6 + $0x108] sm:$0xff]
    %v290 = vld [vmem:[#allocation6 + $0x110] sm:$0xff]
    %v291 = vld [vmem:[#allocation6 + $0x118] sm:$0xff]
    %v292 = vld [vmem:[#allocation6 + $0x120] sm:$0xff]
    %v293 = vld [vmem:[#allocation6 + $0x128] sm:$0xff]
    %v294 = vld [vmem:[#allocation6 + $0x130] sm:$0xff]
    %v295 = vld [vmem:[#allocation6 + $0x138] sm:$0xff]
    %v296 = vld [vmem:[#allocation6 + $0x140] sm:$0xff]
    %v297 = vld [vmem:[#allocation6 + $0x148] sm:$0xff]
    %v298 = vld [vmem:[#allocation6 + $0x150] sm:$0xff]
    %v299 = vld [vmem:[#allocation6 + $0x158] sm:$0xff]
    %v300 = vld [vmem:[#allocation6 + $0x160] sm:$0xff]
    %v301 = vld [vmem:[#allocation6 + $0x168] sm:$0xff]
    %v302 = vld [vmem:[#allocation6 + $0x170] sm:$0xff]
    %v303 = vld [vmem:[#allocation6 + $0x178] sm:$0xff]
    %v304 = vld [vmem:[#allocation6 + $0x180] sm:$0xff]
    %v305 = vld [vmem:[#allocation6 + $0x188] sm:$0xff]
    %v306 = vld [vmem:[#allocation6 + $0x190] sm:$0xff]
    %v307 = vld [vmem:[#allocation6 + $0x198] sm:$0xff]
    %v308 = vld [vmem:[#allocation6 + $0x1a0] sm:$0xff]
    %v309 = vld [vmem:[#allocation6 + $0x1a8] sm:$0xff]
    %v310 = vld [vmem:[#allocation6 + $0x1b0] sm:$0xff]
    %v311 = vld [vmem:[#allocation6 + $0x1b8] sm:$0xff]
    %v312 = vld [vmem:[#allocation6 + $0x1c0] sm:$0xff]
    %v313 = vld [vmem:[#allocation6 + $0x1c8] sm:$0xff]
    %v314 = vld [vmem:[#allocation6 + $0x1d0] sm:$0xff]
    %v315 = vld [vmem:[#allocation6 + $0x1d8] sm:$0xff]
    %v316 = vld [vmem:[#allocation6 + $0x1e0] sm:$0xff]
    %v317 = vld [vmem:[#allocation6 + $0x1e8] sm:$0xff]
    %v318 = vld [vmem:[#allocation6 + $0x1f0] sm:$0xff]
    %v319 = vld [vmem:[#allocation6 + $0x1f8] sm:$0xff]
    %v320 = vld [vmem:[#allocation6 + $0x200] sm:$0xff]
    %v321 = vld [vmem:[#allocation6 + $0x208] sm:$0xff]
    %v322 = vld [vmem:[#allocation6 + $0x210] sm:$0xff]
    %v323 = vld [vmem:[#allocation6 + $0x218] sm:$0xff]
    %v324 = vld [vmem:[#allocation6 + $0x220] sm:$0xff]
    %v325 = vld [vmem:[#allocation6 + $0x228] sm:$0xff]
    %v326 = vld [vmem:[#allocation6 + $0x230] sm:$0xff]
    %v327 = vld [vmem:[#allocation6 + $0x238] sm:$0xff]
    %v328 = vld [vmem:[#allocation6 + $0x240] sm:$0xff]
    %v329 = vld [vmem:[#allocation6 + $0x248] sm:$0xff]
    %v330 = vld [vmem:[#allocation6 + $0x250] sm:$0xff]
    %v331 = vld [vmem:[#allocation6 + $0x258] sm:$0xff]
    %v332 = vld [vmem:[#allocation6 + $0x260] sm:$0xff]
    %v333 = vld [vmem:[#allocation6 + $0x268] sm:$0xff]
    %v334 = vld [vmem:[#allocation6 + $0x270] sm:$0xff]
    %v335 = vld [vmem:[#allocation6 + $0x278] sm:$0xff]
    %v336 = vld [vmem:[#allocation6 + $0x280] sm:$0xff]
    %v337 = vld [vmem:[#allocation6 + $0x288] sm:$0xff]
    %v338 = vld [vmem:[#allocation6 + $0x290] sm:$0xff]
    %v339 = vld [vmem:[#allocation6 + $0x298] sm:$0xff]
    %v340 = vld [vmem:[#allocation6 + $0x2a0] sm:$0xff]
    %v341 = vld [vmem:[#allocation6 + $0x2a8] sm:$0xff]
    %v342 = vld [vmem:[#allocation6 + $0x2b0] sm:$0xff]
    %v343 = vld [vmem:[#allocation6 + $0x2b8] sm:$0xff]
    %v344 = vld [vmem:[#allocation6 + $0x2c0] sm:$0xff]
    %v345 = vld [vmem:[#allocation6 + $0x2c8] sm:$0xff]
    %v346 = vld [vmem:[#allocation6 + $0x2d0] sm:$0xff]
    %v347 = vld [vmem:[#allocation6 + $0x2d8] sm:$0xff]
    %v348 = vld [vmem:[#allocation6 + $0x2e0] sm:$0xff]
    %v349 = vld [vmem:[#allocation6 + $0x2e8] sm:$0xff]
    %v350 = vld [vmem:[#allocation6 + $0x2f0] sm:$0xff]
    %v351 = vld [vmem:[#allocation6 + $0x2f8] sm:$0xff]
    %v352 = vld [vmem:[#allocation6 + $0x300] sm:$0xff]
    %v353 = vld [vmem:[#allocation6 + $0x308] sm:$0xff]
    %v354 = vld [vmem:[#allocation6 + $0x310] sm:$0xff]
    %v355 = vld [vmem:[#allocation6 + $0x318] sm:$0xff]
    %v356 = vld [vmem:[#allocation6 + $0x320] sm:$0xff]
    %v357 = vld [vmem:[#allocation6 + $0x328] sm:$0xff]
    %v358 = vld [vmem:[#allocation6 + $0x330] sm:$0xff]
    %v359 = vld [vmem:[#allocation6 + $0x338] sm:$0xff]
    %v360 = vld [vmem:[#allocation6 + $0x340] sm:$0xff]
    %v361 = vld [vmem:[#allocation6 + $0x348] sm:$0xff]
    %v362 = vld [vmem:[#allocation6 + $0x350] sm:$0xff]
    %v363 = vld [vmem:[#allocation6 + $0x358] sm:$0xff]
    %v364 = vld [vmem:[#allocation6 + $0x360] sm:$0xff]
    %v365 = vld [vmem:[#allocation6 + $0x368] sm:$0xff]
    %v366 = vld [vmem:[#allocation6 + $0x370] sm:$0xff]
    %v367 = vld [vmem:[#allocation6 + $0x378] sm:$0xff]
    %v368 = vld [vmem:[#allocation6 + $0x380] sm:$0xff]
    %v369 = vld [vmem:[#allocation6 + $0x388] sm:$0xff]
    %v370 = vld [vmem:[#allocation6 + $0x390] sm:$0xff]
    %v371 = vld [vmem:[#allocation6 + $0x398] sm:$0xff]
    %v372 = vld [vmem:[#allocation6 + $0x3a0] sm:$0xff]
    %v373 = vld [vmem:[#allocation6 + $0x3a8] sm:$0xff]
    %v374 = vld [vmem:[#allocation6 + $0x3b0] sm:$0xff]
    %v375 = vld [vmem:[#allocation6 + $0x3b8] sm:$0xff]
    %v376 = vld [vmem:[#allocation6 + $0x3c0] sm:$0xff]
    %v377 = vld [vmem:[#allocation6 + $0x3c8] sm:$0xff]
    %v378 = vld [vmem:[#allocation6 + $0x3d0] sm:$0xff]
    %v379 = vld [vmem:[#allocation6 + $0x3d8] sm:$0xff]
    %v380 = vld [vmem:[#allocation6 + $0x3e0] sm:$0xff]
    %v381 = vld [vmem:[#allocation6 + $0x3e8] sm:$0xff]
    %v382 = vld [vmem:[#allocation6 + $0x3f0] sm:$0xff]
    %v383 = vld [vmem:[#allocation6 + $0x3f8] sm:$0xff]
    %v384 = vld [vmem:[%s4] sm:$0xf]
    %v386 = vlaneseq
    %v387 = vshrl.u32 %v386, 7
    %v388 = vsub.s32 0, %v387
    %v389 = vrot.slane %v384, %v388
    %v390 = vlaneseq
    %v391 = vshrl.u32 %v390, 7
    %v392 = vsub.s32 1, %v391
    %v393 = vrot.slane %v384, %v392
    %v394 = vlaneseq
    %v395 = vshrl.u32 %v394, 7
    %v396 = vsub.s32 2, %v395
    %v397 = vrot.slane %v384, %v396
    %v398 = vlaneseq
    %v399 = vshrl.u32 %v398, 7
    %v400 = vsub.s32 3, %v399
    %v401 = vrot.slane %v384, %v400
    %406 = vmatprep.subr.mxu0 %v257
    %407 = vmatpush1.msra.mxu0 %v256
    %408 = vmatprep.subr.mxu0 %v261
    %409 = vmatpush1.msra.mxu0 %v260
    %410 = vmatprep.subr.mxu0 %v265
    %411 = vmatpush1.msra.mxu0 %v264
    %412 = vmatprep.subr.mxu0 %v269
    %413 = vmatpush1.msra.mxu0 %v268
    %414 = vmatprep.subr.mxu0 %v273
    %415 = vmatpush1.msra.mxu0 %v272
    %416 = vmatprep.subr.mxu0 %v277
    %417 = vmatpush1.msra.mxu0 %v276
    %418 = vmatprep.subr.mxu0 %v281
    %419 = vmatpush1.msra.mxu0 %v280
    %420 = vmatprep.subr.mxu0 %v285
    %421 = vmatpush1.msra.mxu0 %v284
    %422 = vmatprep.subr.mxu0 %v289
    %423 = vmatpush1.msra.mxu0 %v288
    %424 = vmatprep.subr.mxu0 %v293
    %425 = vmatpush1.msra.mxu0 %v292
    %426 = vmatprep.subr.mxu0 %v297
    %427 = vmatpush1.msra.mxu0 %v296
    %428 = vmatprep.subr.mxu0 %v301
    %429 = vmatpush1.msra.mxu0 %v300
    %430 = vmatprep.subr.mxu0 %v305
    %431 = vmatpush1.msra.mxu0 %v304
    %432 = vmatprep.subr.mxu0 %v309
    %433 = vmatpush1.msra.mxu0 %v308
    %434 = vmatprep.subr.mxu0 %v313
    %435 = vmatpush1.msra.mxu0 %v312
    %436 = vmatprep.subr.mxu0 %v317
    %437 = vmatpush1.msra.mxu0 %v316
    %438 = vmatprep.subr.mxu0 %v321
    %439 = vmatpush1.msra.mxu0 %v320
    %440 = vmatprep.subr.mxu0 %v325
    %441 = vmatpush1.msra.mxu0 %v324
    %442 = vmatprep.subr.mxu0 %v329
    %443 = vmatpush1.msra.mxu0 %v328
    %444 = vmatprep.subr.mxu0 %v333
    %445 = vmatpush1.msra.mxu0 %v332
    %446 = vmatprep.subr.mxu0 %v337
    %447 = vmatpush1.msra.mxu0 %v336
    %448 = vmatprep.subr.mxu0 %v341
    %449 = vmatpush1.msra.mxu0 %v340
    %450 = vmatprep.subr.mxu0 %v345
    %451 = vmatpush1.msra.mxu0 %v344
    %452 = vmatprep.subr.mxu0 %v349
    %453 = vmatpush1.msra.mxu0 %v348
    %454 = vmatprep.subr.mxu0 %v353
    %455 = vmatpush1.msra.mxu0 %v352
    %456 = vmatprep.subr.mxu0 %v357
    %457 = vmatpush1.msra.mxu0 %v356
    %458 = vmatprep.subr.mxu0 %v361
    %459 = vmatpush1.msra.mxu0 %v360
    %460 = vmatprep.subr.mxu0 %v365
    %461 = vmatpush1.msra.mxu0 %v364
    %462 = vmatprep.subr.mxu0 %v369
    %463 = vmatpush1.msra.mxu0 %v368
    %464 = vmatprep.subr.mxu0 %v373
    %465 = vmatpush1.msra.mxu0 %v372
    %466 = vmatprep.subr.mxu0 %v377
    %467 = vmatpush1.msra.mxu0 %v376
    %468 = vmatprep.subr.mxu0 %v381
    %469 = vmatpush1.msra.mxu0 %v380
    %470 = vmatprep.mubr.f32.mxu0 %v255
    %471 = vmatmul.mubr.f32.gmra.mrb[0].mxu0 %v254
    %v472 = vpop.f32.mrb[0].mxu0
    %v473 = vadd.f32 %v389, %v472
    %v474 = vpop.f32.mrb[0].mxu0
    %v475 = vadd.f32 %v393, %v474
    %476 = vdwg.mxu0
    %477 = vmatprep.subr.mxu0 %v259
    %478 = vmatpush1.msra.mxu0 %v258
    %479 = vmatprep.subr.mxu0 %v263
    %480 = vmatpush1.msra.mxu0 %v262
    %481 = vmatprep.subr.mxu0 %v267
    %482 = vmatpush1.msra.mxu0 %v266
    %483 = vmatprep.subr.mxu0 %v271
    %484 = vmatpush1.msra.mxu0 %v270
    %485 = vmatprep.subr.mxu0 %v275
    %486 = vmatpush1.msra.mxu0 %v274
    %487 = vmatprep.subr.mxu0 %v279
    %488 = vmatpush1.msra.mxu0 %v278
    %489 = vmatprep.subr.mxu0 %v283
    %490 = vmatpush1.msra.mxu0 %v282
    %491 = vmatprep.subr.mxu0 %v287
    %492 = vmatpush1.msra.mxu0 %v286
    %493 = vmatprep.subr.mxu0 %v291
    %494 = vmatpush1.msra.mxu0 %v290
    %495 = vmatprep.subr.mxu0 %v295
    %496 = vmatpush1.msra.mxu0 %v294
    %497 = vmatprep.subr.mxu0 %v299
    %498 = vmatpush1.msra.mxu0 %v298
    %499 = vmatprep.subr.mxu0 %v303
    %500 = vmatpush1.msra.mxu0 %v302
    %501 = vmatprep.subr.mxu0 %v307
    %502 = vmatpush1.msra.mxu0 %v306
    %503 = vmatprep.subr.mxu0 %v311
    %504 = vmatpush1.msra.mxu0 %v310
    %505 = vmatprep.subr.mxu0 %v315
    %506 = vmatpush1.msra.mxu0 %v314
    %507 = vmatprep.subr.mxu0 %v319
    %508 = vmatpush1.msra.mxu0 %v318
    %509 = vmatprep.subr.mxu0 %v323
    %510 = vmatpush1.msra.mxu0 %v322
    %511 = vmatprep.subr.mxu0 %v327
    %512 = vmatpush1.msra.mxu0 %v326
    %513 = vmatprep.subr.mxu0 %v331
    %514 = vmatpush1.msra.mxu0 %v330
    %515 = vmatprep.subr.mxu0 %v335
    %516 = vmatpush1.msra.mxu0 %v334
    %517 = vmatprep.subr.mxu0 %v339
    %518 = vmatpush1.msra.mxu0 %v338
    %519 = vmatprep.subr.mxu0 %v343
    %520 = vmatpush1.msra.mxu0 %v342
    %521 = vmatprep.subr.mxu0 %v347
    %522 = vmatpush1.msra.mxu0 %v346
    %523 = vmatprep.subr.mxu0 %v351
    %524 = vmatpush1.msra.mxu0 %v350
    %525 = vmatprep.subr.mxu0 %v355
    %526 = vmatpush1.msra.mxu0 %v354
    %527 = vmatprep.subr.mxu0 %v359
    %528 = vmatpush1.msra.mxu0 %v358
    %529 = vmatprep.subr.mxu0 %v363
    %530 = vmatpush1.msra.mxu0 %v362
    %531 = vmatprep.subr.mxu0 %v367
    %532 = vmatpush1.msra.mxu0 %v366
    %533 = vmatprep.subr.mxu0 %v371
    %534 = vmatpush1.msra.mxu0 %v370
    %535 = vmatprep.subr.mxu0 %v375
    %536 = vmatpush1.msra.mxu0 %v374
    %537 = vmatprep.subr.mxu0 %v379
    %538 = vmatpush1.msra.mxu0 %v378
    %539 = vmatprep.subr.mxu0 %v383
    %540 = vmatpush1.msra.mxu0 %v382
    %541 = vmatprep.mubr.f32.mxu0 %v255
    %542 = vmatmul.mubr.f32.gmra.mrb[0].mxu0 %v254
    %v543 = vpop.f32.mrb[0].mxu0
    %v544 = vadd.f32 %v397, %v543
    %v545 = vpop.f32.mrb[0].mxu0
    %v546 = vadd.f32 %v401, %v545
    %547 = vdwg.mxu0
    %v548 = vmax.f32 %v473, 0.0
    %v549 = vmax.f32 %v475, 0.0
    %v550 = vmax.f32 %v544, 0.0
    %v551 = vmax.f32 %v546, 0.0
    %552 = vst [vmem:[#allocation4] sm:$0xff] %v548
    %553 = vst [vmem:[#allocation4 + $0x8] sm:$0xff] %v549
    %554 = vst [vmem:[#allocation4 + $0x10] sm:$0xff] %v550
    %555 = vst [vmem:[#allocation4 + $0x18] sm:$0xff] %v551
    %v556 = vld [vmem:[#allocation4] sm:$0xff]
    %v557 = vld [vmem:[#allocation4 + $0x8] sm:$0xff]
    %v558 = vld [vmem:[#allocation4 + $0x10] sm:$0xff]
    %v559 = vld [vmem:[#allocation4 + $0x18] sm:$0xff]
    %v560 = vmax.f32 %v556, %v558
    %v561 = vmax.f32 %v557, %v559
    %562 = vst [vmem:[#allocation5] sm:$0xff] %v560
    %563 = vst [vmem:[#allocation5 + $0x8] sm:$0xff] %v561
    %v564 = vld [vmem:[#allocation5] sm:$0xff]
    %v565 = vld [vmem:[#allocation5 + $0x8] sm:$0xff]
    %v566 = vld [vmem:[#allocation9] sm:$0xff]
    %v567 = vld [vmem:[#allocation9 + $0x8] sm:$0xff]
    %v568 = vld [vmem:[#allocation9 + $0x10] sm:$0xff]
    %v569 = vld [vmem:[#allocation9 + $0x18] sm:$0xff]
    %v570 = vld [vmem:[#allocation9 + $0x20] sm:$0xff]
    %v571 = vld [vmem:[#allocation9 + $0x28] sm:$0xff]
    %v572 = vld [vmem:[#allocation9 + $0x30] sm:$0xff]
    %v573 = vld [vmem:[#allocation9 + $0x38] sm:$0xff]
    %v574 = vld [vmem:[#allocation9 + $0x40] sm:$0xff]
    %v575 = vld [vmem:[#allocation9 + $0x48] sm:$0xff]
    %v576 = vld [vmem:[#allocation9 + $0x50] sm:$0xff]
    %v577 = vld [vmem:[#allocation9 + $0x58] sm:$0xff]
    %v578 = vld [vmem:[#allocation9 + $0x60] sm:$0xff]
    %v579 = vld [vmem:[#allocation9 + $0x68] sm:$0xff]
    %v580 = vld [vmem:[#allocation9 + $0x70] sm:$0xff]
    %v581 = vld [vmem:[#allocation9 + $0x78] sm:$0xff]
    %v582 = vld [vmem:[#allocation9 + $0x80] sm:$0xff]
    %v583 = vld [vmem:[#allocation9 + $0x88] sm:$0xff]
    %v584 = vld [vmem:[#allocation9 + $0x90] sm:$0xff]
    %v585 = vld [vmem:[#allocation9 + $0x98] sm:$0xff]
    %v586 = vld [vmem:[#allocation9 + $0xa0] sm:$0xff]
    %v587 = vld [vmem:[#allocation9 + $0xa8] sm:$0xff]
    %v588 = vld [vmem:[#allocation9 + $0xb0] sm:$0xff]
    %v589 = vld [vmem:[#allocation9 + $0xb8] sm:$0xff]
    %v590 = vld [vmem:[#allocation9 + $0xc0] sm:$0xff]
    %v591 = vld [vmem:[#allocation9 + $0xc8] sm:$0xff]
    %v592 = vld [vmem:[#allocation9 + $0xd0] sm:$0xff]
    %v593 = vld [vmem:[#allocation9 + $0xd8] sm:$0xff]
    %v594 = vld [vmem:[#allocation9 + $0xe0] sm:$0xff]
    %v595 = vld [vmem:[#allocation9 + $0xe8] sm:$0xff]
    %v596 = vld [vmem:[#allocation9 + $0xf0] sm:$0xff]
    %v597 = vld [vmem:[#allocation9 + $0xf8] sm:$0xff]
    %v598 = vld [vmem:[%s6] sm:$0x1]
    %v600 = vlaneseq
    %v601 = vshrl.u32 %v600, 7
    %v602 = vsub.s32 0, %v601
    %v603 = vrot.slane %v598, %v602
    %605 = vmatprep.subr.mxu0 0.0
    %606 = vmatpush1.msra.mxu0 %v566
    %607 = vmatprep.subr.mxu0 0.0
    %608 = vmatpush1.msra.mxu0 %v567
    %609 = vmatprep.subr.mxu0 0.0
    %610 = vmatpush1.msra.mxu0 %v568
    %611 = vmatprep.subr.mxu0 0.0
    %612 = vmatpush1.msra.mxu0 %v569
    %613 = vmatprep.subr.mxu0 0.0
    %614 = vmatpush1.msra.mxu0 %v570
    %615 = vmatprep.subr.mxu0 0.0
    %616 = vmatpush1.msra.mxu0 %v571
    %617 = vmatprep.subr.mxu0 0.0
    %618 = vmatpush1.msra.mxu0 %v572
    %619 = vmatprep.subr.mxu0 0.0
    %620 = vmatpush1.msra.mxu0 %v573
    %621 = vmatprep.subr.mxu0 0.0
    %622 = vmatpush1.msra.mxu0 %v574
    %623 = vmatprep.subr.mxu0 0.0
    %624 = vmatpush1.msra.mxu0 %v575
    %625 = vmatprep.subr.mxu0 0.0
    %626 = vmatpush1.msra.mxu0 %v576
    %627 = vmatprep.subr.mxu0 0.0
    %628 = vmatpush1.msra.mxu0 %v577
    %629 = vmatprep.subr.mxu0 0.0
    %630 = vmatpush1.msra.mxu0 %v578
    %631 = vmatprep.subr.mxu0 0.0
    %632 = vmatpush1.msra.mxu0 %v579
    %633 = vmatprep.subr.mxu0 0.0
    %634 = vmatpush1.msra.mxu0 %v580
    %635 = vmatprep.subr.mxu0 0.0
    %636 = vmatpush1.msra.mxu0 %v581
    %637 = vmatprep.subr.mxu0 0.0
    %638 = vmatpush1.msra.mxu0 %v582
    %639 = vmatprep.subr.mxu0 0.0
    %640 = vmatpush1.msra.mxu0 %v583
    %641 = vmatprep.subr.mxu0 0.0
    %642 = vmatpush1.msra.mxu0 %v584
    %643 = vmatprep.subr.mxu0 0.0
    %644 = vmatpush1.msra.mxu0 %v585
    %645 = vmatprep.subr.mxu0 0.0
    %646 = vmatpush1.msra.mxu0 %v586
    %647 = vmatprep.subr.mxu0 0.0
    %648 = vmatpush1.msra.mxu0 %v587
    %649 = vmatprep.subr.mxu0 0.0
    %650 = vmatpush1.msra.mxu0 %v588
    %651 = vmatprep.subr.mxu0 0.0
    %652 = vmatpush1.msra.mxu0 %v589
    %653 = vmatprep.subr.mxu0 0.0
    %654 = vmatpush1.msra.mxu0 %v590
    %655 = vmatprep.subr.mxu0 0.0
    %656 = vmatpush1.msra.mxu0 %v591
    %657 = vmatprep.subr.mxu0 0.0
    %658 = vmatpush1.msra.mxu0 %v592
    %659 = vmatprep.subr.mxu0 0.0
    %660 = vmatpush1.msra.mxu0 %v593
    %661 = vmatprep.subr.mxu0 0.0
    %662 = vmatpush1.msra.mxu0 %v594
    %663 = vmatprep.subr.mxu0 0.0
    %664 = vmatpush1.msra.mxu0 %v595
    %665 = vmatprep.subr.mxu0 0.0
    %666 = vmatpush1.msra.mxu0 %v596
    %667 = vmatprep.subr.mxu0 0.0
    %668 = vmatpush1.msra.mxu0 %v597
    %669 = vmatprep.mubr.f32.mxu0 %v565
    %670 = vmatmul.mubr.f32.gmra.mrb[0].mxu0 %v564
    %v671 = vpop.f32.mrb[0].mxu0
    %v672 = vadd.f32 %v603, %v671
    %v673 = vpop.f32.mrb[0].mxu0
    %674 = vdwg.mxu0
    %v675 = vmax.f32 %v672, 0.0
    %v676 = vld [vmem:[%s7] sm:$0xff]
    %v677 = vld [vmem:[%s7 + $0x8] sm:$0xff]
    %v678 = vld [vmem:[%s7 + $0x10] sm:$0xff]
    %v679 = vld [vmem:[%s7 + $0x18] sm:$0xff]
    %v680 = vld [vmem:[%s7 + $0x20] sm:$0xff]
    %v681 = vld [vmem:[%s7 + $0x28] sm:$0xff]
    %v682 = vld [vmem:[%s7 + $0x30] sm:$0xff]
    %v683 = vld [vmem:[%s7 + $0x38] sm:$0xff]
    %v684 = vld [vmem:[%s7 + $0x40] sm:$0xff]
    %v685 = vld [vmem:[%s7 + $0x48] sm:$0xff]
    %v686 = vld [vmem:[%s7 + $0x50] sm:$0xff]
    %v687 = vld [vmem:[%s7 + $0x58] sm:$0xff]
    %v688 = vld [vmem:[%s7 + $0x60] sm:$0xff]
    %v689 = vld [vmem:[%s7 + $0x68] sm:$0xff]
    %v690 = vld [vmem:[%s7 + $0x70] sm:$0xff]
    %v691 = vld [vmem:[%s7 + $0x78] sm:$0xff]
    %v692 = vld [vmem:[%s8] sm:$0x1]
    %v694 = vlaneseq
    %v695 = vshrl.u32 %v694, 7
    %v696 = vsub.s32 0, %v695
    %v697 = vrot.slane %v692, %v696
    %699 = vmatprep.subr.mxu0 0.0
    %700 = vmatpush1.msra.mxu0 %v676
    %701 = vmatprep.subr.mxu0 0.0
    %702 = vmatpush1.msra.mxu0 %v677
    %703 = vmatprep.subr.mxu0 0.0
    %704 = vmatpush1.msra.mxu0 %v678
    %705 = vmatprep.subr.mxu0 0.0
    %706 = vmatpush1.msra.mxu0 %v679
    %707 = vmatprep.subr.mxu0 0.0
    %708 = vmatpush1.msra.mxu0 %v680
    %709 = vmatprep.subr.mxu0 0.0
    %710 = vmatpush1.msra.mxu0 %v681
    %711 = vmatprep.subr.mxu0 0.0
    %712 = vmatpush1.msra.mxu0 %v682
    %713 = vmatprep.subr.mxu0 0.0
    %714 = vmatpush1.msra.mxu0 %v683
    %715 = vmatprep.subr.mxu0 0.0
    %716 = vmatpush1.msra.mxu0 %v684
    %717 = vmatprep.subr.mxu0 0.0
    %718 = vmatpush1.msra.mxu0 %v685
    %719 = vmatprep.subr.mxu0 0.0
    %720 = vmatpush1.msra.mxu0 %v686
    %721 = vmatprep.subr.mxu0 0.0
    %722 = vmatpush1.msra.mxu0 %v687
    %723 = vmatprep.subr.mxu0 0.0
    %724 = vmatpush1.msra.mxu0 %v688
    %725 = vmatprep.subr.mxu0 0.0
    %726 = vmatpush1.msra.mxu0 %v689
    %727 = vmatprep.subr.mxu0 0.0
    %728 = vmatpush1.msra.mxu0 %v690
    %729 = vmatprep.subr.mxu0 0.0
    %730 = vmatpush1.msra.mxu0 %v691
    %731 = vmatprep.subr.mxu0 0.0
    %732 = vmatpush1.msra.mxu0 0.0
    %733 = vmatprep.subr.mxu0 0.0
    %734 = vmatpush1.msra.mxu0 0.0
    %735 = vmatprep.subr.mxu0 0.0
    %736 = vmatpush1.msra.mxu0 0.0
    %737 = vmatprep.subr.mxu0 0.0
    %738 = vmatpush1.msra.mxu0 0.0
    %739 = vmatprep.subr.mxu0 0.0
    %740 = vmatpush1.msra.mxu0 0.0
    %741 = vmatprep.subr.mxu0 0.0
    %742 = vmatpush1.msra.mxu0 0.0
    %743 = vmatprep.subr.mxu0 0.0
    %744 = vmatpush1.msra.mxu0 0.0
    %745 = vmatprep.subr.mxu0 0.0
    %746 = vmatpush1.msra.mxu0 0.0
    %747 = vmatprep.subr.mxu0 0.0
    %748 = vmatpush1.msra.mxu0 0.0
    %749 = vmatprep.subr.mxu0 0.0
    %750 = vmatpush1.msra.mxu0 0.0
    %751 = vmatprep.subr.mxu0 0.0
    %752 = vmatpush1.msra.mxu0 0.0
    %753 = vmatprep.subr.mxu0 0.0
    %754 = vmatpush1.msra.mxu0 0.0
    %755 = vmatprep.subr.mxu0 0.0
    %756 = vmatpush1.msra.mxu0 0.0
    %757 = vmatprep.subr.mxu0 0.0
    %758 = vmatpush1.msra.mxu0 0.0
    %759 = vmatprep.subr.mxu0 0.0
    %760 = vmatpush1.msra.mxu0 0.0
    %761 = vmatprep.subr.mxu0 0.0
    %762 = vmatpush1.msra.mxu0 0.0
    %763 = vmatprep.mubr.f32.mxu0 0.0
    %764 = vmatmul.mubr.f32.gmra.mrb[0].mxu0 %v675
    %v765 = vpop.f32.mrb[0].mxu0
    %v766 = vadd.f32 %v697, %v765
    %v767 = vpop.f32.mrb[0].mxu0
    %768 = vdwg.mxu0
    %vm769 = vcmask 64512
    %770 = vst.msk [vmem:[#allocation11] sm:$0xff] %vm769, %v766
    // Predicated region
    $region46: #{tpu_custom_call.1} parent=1 // pred_check
      _
    $region47: #{tpu_custom_call.1} parent=1 // pred_check_branch
      %772 = sbr.rel (0) target = $region49
    $region48: #{tpu_custom_call.1} parent=1 // pred_region
      %s774 = ssub.s32 128, 128
      %775 = vsyncadd [#allocation8], %s774
      %s777 = sshll.u32 [#allocation11], 4
      %s778 = int_to_ptr.vmem [resolvable:$true] %s777
      %780 = dma.vmem_to_hbm [thread:$0]  %s778, 128, %s9, [#allocation8]
    $region49: #{tpu_custom_call.1} parent=1 // pred_fallthru
      _
    // Predicated region
    $region50: #{tpu_custom_call.1} parent=1 // pred_check
      _
    $region51: #{tpu_custom_call.1} parent=1 // pred_check_branch
      %782 = sbr.rel (0) target = $region53
    $region52: #{tpu_custom_call.1} parent=1 // pred_region
      %783 = dma.done [#allocation8], 128
    $region53: #{tpu_custom_call.1} parent=1 // pred_fallthru
      _
    %784 = vsyncpa [#allocation7], 1
    %785 = vsyncpa [#allocation10], 1
    %786 = vsyncpa [#allocation8], 1

</llo_original>
